<compile_context>
chip_gen: v6e
topology: v6e:2x2x1
jax: 0.10.0
libtpu: 0.0.40
codegen_flags: <defaults>
</compile_context>

<pallas_src>
import functools
import math

import jax
import jax.numpy as jnp
import numpy as np
from jax.experimental import pallas as pl
from jax.experimental.pallas import tpu as pltpu


# ----------------------------------------------------------------------------
# Generation-aware VMEM limit (~0.75x physical; safe 48 MiB fallback for v7x)
# ----------------------------------------------------------------------------
_VMEM_LIMIT = None


def _vmem_limit_bytes():
    global _VMEM_LIMIT
    if _VMEM_LIMIT is None:
        limit = 48 * 1024 * 1024          # safe default (below v7x 64 MiB physical)
        try:
            cap = int(pltpu.get_tpu_info().vmem_capacity_bytes)
            if cap > 0:
                limit = (cap * 3) // 4    # ~96 MiB on v5e/v6e, ~48 MiB on v7x
        except Exception:
            pass
        _VMEM_LIMIT = limit
    return _VMEM_LIMIT


# ----------------------------------------------------------------------------
# Probe: is pipeline_mode=pl.Buffered(1) (single-buffered resident operands)
# supported & correct on this JAX/Mosaic build?  Fall back gracefully if not.
# ----------------------------------------------------------------------------
_SINGLE_BUFFER_OK = None


def _probe_copy_kernel(x_ref, o_ref):
    o_ref[...] = x_ref[...]


def _single_buffer_ok():
    global _SINGLE_BUFFER_OK
    if _SINGLE_BUFFER_OK is None:
        try:
            spec = pl.BlockSpec((8, 128), lambda i: (0, 0),
                                pipeline_mode=pl.Buffered(1))
            ones = jnp.ones((8, 128), jnp.float32)
            out = pl.pallas_call(
                _probe_copy_kernel,
                out_shape=jax.ShapeDtypeStruct((8, 128), jnp.float32),
                grid=(2,),
                in_specs=[spec],
                out_specs=pl.BlockSpec((8, 128), lambda i: (0, 0)),
            )(ones)
            out = jax.block_until_ready(out)
            _SINGLE_BUFFER_OK = bool(jnp.all(out == 1.0))
        except Exception:
            _SINGLE_BUFFER_OK = False
    return _SINGLE_BUFFER_OK


# ----------------------------------------------------------------------------
# Pallas kernels
# ----------------------------------------------------------------------------
def linear_kernel(x_ref, w_ref, b_ref, o_ref):
    """o = x @ w + b   (w already transposed to (in, out); w/b grid-resident)."""
    o_ref[...] = (
        jnp.dot(x_ref[...], w_ref[...], preferred_element_type=jnp.float32)
        + b_ref[...]
    )


def mat_attn_kernel(qkv_ref, mask_ref, adj_ref, dist_ref, o_ref, *,
                    h, d_k, n_batch, q_plane, k_plane, v_plane,
                    lam_attn, lam_dist, lam_adj, eps, inf_val):
    """Fused MAT attention for a block of `n_batch` batch elements, all heads.

    Block shapes:
      qkv   : (P, n_batch, N, hsize)   P = 1 (shared q/k/v) or 3
      mask  : (n_batch, 1, N)
      adj   : (n_batch, N, N)
      dist  : (n_batch, N, N)
      out   : (n_batch, N, hsize)      lane-dense output
    """
    n = o_ref.shape[1]
    inv_sqrt_dk = 1.0 / math.sqrt(d_k)

    for bb in range(n_batch):                      # static unroll (small n_batch)
        key_invalid = mask_ref[bb] == 0.0                              # (1, N)
        # Additive mask bias, broadcast to the scores shape ONCE (hoisted out of
        # the head loop -- JAX does not CSE broadcast_in_dim).
        bias = jnp.broadcast_to(
            jnp.where(key_invalid, -inf_val, 0.0), (n, n))             # (N, N)

        # ---- head-independent term, fused in-kernel -------------------------
        #   S = lam_dist * softmax(-dist_masked) + lam_adj * rownorm(adj)
        # (N,N) divides replaced by (N,1) reciprocal scales with lam_* folded in.
        # NOTE: a fully-masked row gives NaN here (exp(-inf - -inf)), exactly
        # like the PyTorch/JAX reference -- padding-only molecules are invalid.
        adj = adj_ref[bb]                                              # (N, N)
        dist = dist_ref[bb]                                            # (N, N)
        adj_scale = lam_adj / (jnp.sum(adj, axis=-1, keepdims=True) + eps)
        neg_dist = jnp.where(key_invalid, -jnp.inf, -dist)
        de = jnp.exp(neg_dist - jnp.max(neg_dist, axis=-1, keepdims=True))
        dist_scale = lam_dist / jnp.sum(de, axis=-1, keepdims=True)
        s = de * dist_scale + adj * adj_scale                          # (N, N)

        # Shared value contraction: ONE (N,N)@(N,hsize) MXU matmul, written
        # lane-dense into the output block; heads then accumulate on top.
        v_full = qkv_ref[v_plane, bb]                                  # (N, hsize)
        o_ref[bb] = jnp.dot(
            s, v_full, preferred_element_type=jnp.float32).astype(o_ref.dtype)

        # ---- per-head attention with deferred softmax normalization ---------
        for i in range(h):
            lo = i * d_k
            hi = lo + d_k
            qh = qkv_ref[q_plane, bb, :, lo:hi] * inv_sqrt_dk          # (N, d_k)
            kh = qkv_ref[k_plane, bb, :, lo:hi]                        # (N, d_k)
            vh = qkv_ref[v_plane, bb, :, lo:hi]                        # (N, d_k)
            scores = jax.lax.dot_general(
                qh, kh, (((1,), (1,)), ((), ())),
                preferred_element_type=jnp.float32) + bias             # (N, N)
            e = jnp.exp(scores - jnp.max(scores, axis=-1, keepdims=True))
            # deferred normalization: fold lam_attn into the (N,1) row scale
            row_scale = lam_attn / jnp.sum(e, axis=-1, keepdims=True)  # (N, 1)
            head = jnp.dot(e, vh, preferred_element_type=jnp.float32)  # (N, d_k)
            o_ref[bb, :, lo:hi] = (
                o_ref[bb, :, lo:hi] + row_scale * head).astype(o_ref.dtype)


# ----------------------------------------------------------------------------
# Tiling heuristics
# ----------------------------------------------------------------------------
def _pick_tile_m(M, target=512):
    """Row tile for the linear kernel: a divisor of M (no pad copy), multiple of
    8 (TPU sublane tiling) unless it is all of M, up to 2*target rows."""
    cap = max(2 * target, 8)
    if M <= cap:
        return M                       # single block; block dim == array dim
    for t in range(min(cap, M), 7, -1):
        if M % t == 0 and t % 8 == 0:
            return t
    return None                        # caller falls back to padding


def _pick_batch_block(B, N, hsize, planes, vmem_limit):
    """How many batch elements to fuse per attention grid step (amortizes the
    ~0.35us/step overhead for tiny molecules; 1 for realistic MAT sizes)."""
    per_b = (planes * N * hsize + 2 * N * N + N + N * hsize) * 4
    target = 512 * 1024
    bt = max(1, min(B, target // max(per_b, 1)))
    while bt > 1 and 2 * bt * per_b > vmem_limit // 3:
        bt -= 1
    while B % bt:
        bt -= 1
    return bt


# ----------------------------------------------------------------------------
# Wrappers
# ----------------------------------------------------------------------------
def pallas_linear(x2d, w_t, b_row, *, target_tile_m=512):
    """x2d: (M, in), w_t: (in, out) already transposed, b_row: (1, out)."""
    M, in_dim = x2d.shape
    out_dim = w_t.shape[1]

    tm = _pick_tile_m(M, target_tile_m)
    if tm is None:
        # Rare fallback (M large with no multiple-of-8 divisor <= 1024): pad.
        tm = target_tile_m
        m_pad = pl.cdiv(M, tm) * tm
        x_p = jnp.pad(x2d, ((0, m_pad - M), (0, 0)))
    else:
        m_pad, x_p = M, x2d

    resident_kw = {}
    if _single_buffer_ok():
        # W / bias are grid-resident (constant index_map): single-buffer them.
        resident_kw = dict(pipeline_mode=pl.Buffered(1))
    w_spec = pl.BlockSpec((in_dim, out_dim), lambda i: (0, 0), **resident_kw)
    b_spec = pl.BlockSpec((1, out_dim), lambda i: (0, 0), **resident_kw)

    out = pl.pallas_call(
        linear_kernel,
        out_shape=jax.ShapeDtypeStruct((m_pad, out_dim), jnp.float32),
        grid=(m_pad // tm,),
        in_specs=[
            pl.BlockSpec((tm, in_dim), lambda i: (i, 0)),
            w_spec,
            b_spec,
        ],
        out_specs=pl.BlockSpec((tm, out_dim), lambda i: (i, 0)),
        compiler_params=pltpu.CompilerParams(
            dimension_semantics=("parallel",),
            vmem_limit_bytes=_vmem_limit_bytes()),
    )(x_p, w_t, b_row)
    return out if m_pad == M else out[:M]


def pallas_mat_attention(qkv, mask, adj, dist, *, h, lam_attn, lam_dist,
                         lam_adj, eps=1e-6, inf_val=1e12):
    """qkv: (P, B, N, hsize) with P==1 (shared q/k/v) or P==3 ([q;k;v])."""
    P, B, N, hsize = qkv.shape
    d_k = hsize // h
    q_plane, k_plane, v_plane = (0, 0, 0) if P == 1 else (0, 1, 2)

    vmem = _vmem_limit_bytes()
    bt = _pick_batch_block(B, N, hsize, P, vmem)

    kern = functools.partial(
        mat_attn_kernel, h=h, d_k=d_k, n_batch=bt,
        q_plane=q_plane, k_plane=k_plane, v_plane=v_plane,
        lam_attn=lam_attn, lam_dist=lam_dist, lam_adj=lam_adj,
        eps=eps, inf_val=inf_val)

    return pl.pallas_call(
        kern,
        out_shape=jax.ShapeDtypeStruct((B, N, hsize), jnp.float32),
        grid=(B // bt,),
        in_specs=[
            # ONE fused qkv operand: all planes, bt batch elements per step.
            pl.BlockSpec((P, bt, N, hsize), lambda b: (0, b, 0, 0)),
            pl.BlockSpec((bt, 1, N), lambda b: (b, 0, 0)),
            pl.BlockSpec((bt, N, N), lambda b: (b, 0, 0)),
            pl.BlockSpec((bt, N, N), lambda b: (b, 0, 0)),
        ],
        out_specs=pl.BlockSpec((bt, N, hsize), lambda b: (b, 0, 0)),
        compiler_params=pltpu.CompilerParams(
            dimension_semantics=("parallel",),
            vmem_limit_bytes=vmem),
    )(qkv, mask, adj, dist)


def multi_headed_mat_attention(query, key, value, mask, adj, dist, params, *,
                               h, lambda_attention=0.33, lambda_distance=0.33,
                               eps=1e-6, inf=1e12):
    """Full forward pass matching the PyTorch module (dropout_p = 0)."""
    B, N, hsize = query.shape
    lam_adj = 1.0 - lambda_attention - lambda_distance
    W_qkv, b_qkv, W_out, b_out = params

    # Hoist weight transposes / bias reshapes out of the pallas_linear calls.
    W_qkv_t = W_qkv.T
    W_out_t = W_out.T
    b_qkv_row = b_qkv.reshape(1, hsize)
    b_out_row = b_out.reshape(1, hsize)

    # Shared-weight Q/K/V projection.  Self-attention (q is k is v): project
    # ONCE and reuse -- no concat, no slice copies.  Otherwise one fused matmul
    # on the stacked rows; the (P, B, N, hsize) reshape afterwards is free and
    # feeds the attention kernel as a single operand.
    shared_qkv = (query is key) and (key is value)
    if shared_qkv:
        proj_in = query.reshape(B * N, hsize)
        planes = 1
    else:
        proj_in = jnp.concatenate(
            [query.reshape(B * N, hsize),
             key.reshape(B * N, hsize),
             value.reshape(B * N, hsize)], axis=0)
        planes = 3
    qkv = pallas_linear(proj_in, W_qkv_t, b_qkv_row)
    qkv = qkv.reshape(planes, B, N, hsize)

    # Fused attention: mask/adj/dist go straight into the kernel (no (B,N,N)
    # intermediate), output comes back lane-dense as (B, N, hsize).
    x = pallas_mat_attention(qkv, mask, adj, dist, h=h,
                             lam_attn=lambda_attention,
                             lam_dist=lambda_distance,
                             lam_adj=lam_adj, eps=eps, inf_val=inf)

    out = pallas_linear(x.reshape(B * N, hsize), W_out_t, b_out_row)
    return out.reshape(B, N, hsize)


# ----------------------------------------------------------------------------
# Pure-JAX reference (correctness check only)
# ----------------------------------------------------------------------------
def reference_forward(query, key, value, mask, adj, dist, params, *, h,
                      lambda_attention=0.33, lambda_distance=0.33,
                      eps=1e-6, inf=1e12):
    B, N, hsize = query.shape
    d_k = hsize // h
    lam_adj = 1.0 - lambda_attention - lambda_distance
    W_qkv, b_qkv, W_out, b_out = params

    def project(x):
        y = x @ W_qkv.T + b_qkv
        return y.reshape(B, N, h, d_k).transpose(0, 2, 1, 3)

    q, k, v = project(query), project(key), project(value)
    scores = jnp.einsum('bhqd,bhkd->bhqk', q, k) / math.sqrt(d_k)
    key_invalid = (mask[:, 0, :] == 0.0)                       # (B, N)
    scores = jnp.where(key_invalid[:, None, None, :], -inf, scores)
    p_attn = jax.nn.softmax(scores, axis=-1)
    adj_norm = adj / (jnp.sum(adj, axis=-1, keepdims=True) + eps)
    p_adj = adj_norm[:, None, :, :]
    dist_m = jnp.where(key_invalid[:, None, :], jnp.inf, dist)
    p_dist = jax.nn.softmax(-dist_m, axis=-1)[:, None, :, :]
    p = lambda_attention * p_attn + lambda_distance * p_dist + lam_adj * p_adj
    x = jnp.einsum('bhqk,bhkd->bhqd', p, v)
    x = x.transpose(0, 2, 1, 3).reshape(B, N, hsize)
    return x @ W_out.T + b_out


# ----------------------------------------------------------------------------
# Main
# ----------------------------------------------------------------------------
if __name__ == "__main__":
    B, N, h, hsize = 2, 8, 4, 32   # d_k = 8

    key0 = jax.random.PRNGKey(0)
    k1, k2, k3, k4, k5, k6, k7, k8 = jax.random.split(key0, 8)

    # deterministic parameter init (torch.nn.Linear-style uniform bound)
    bound = 1.0 / math.sqrt(hsize)
    W_qkv = jax.random.uniform(k1, (hsize, hsize), jnp.float32, -bound, bound)
    b_qkv = jax.random.uniform(k2, (hsize,), jnp.float32, -bound, bound)
    W_out = jax.random.uniform(k3, (hsize, hsize), jnp.float32, -bound, bound)
    b_out = jax.random.uniform(k4, (hsize,), jnp.float32, -bound, bound)
    params = (W_qkv, b_qkv, W_out, b_out)

    # inputs
    node = jax.random.normal(k5, (B, N, hsize), jnp.float32)
    node2 = jax.random.normal(k8, (B, N, hsize), jnp.float32)
    # symmetric 0/1 adjacency with self-loops
    rnd = jax.random.uniform(k6, (B, N, N), jnp.float32)
    adj = (0.5 * (rnd + rnd.transpose(0, 2, 1)) > 0.5).astype(jnp.float32)
    adj = jnp.maximum(adj, jnp.eye(N, dtype=jnp.float32)[None])
    # nonnegative symmetric "distance" matrix, zero diagonal
    d = jax.random.uniform(k7, (B, N, N), jnp.float32, 0.5, 5.0)
    dist = 0.5 * (d + d.transpose(0, 2, 1)) * (1.0 - jnp.eye(N)[None])
    # mask: (B, 1, N); last node of batch 1 is padding
    mask = jnp.ones((B, 1, N), jnp.float32).at[1, 0, N - 1].set(0.0)

    # 1) self-attention path (q is k is v): single projection, 1-plane qkv
    out = multi_headed_mat_attention(node, node, node, mask, adj, dist,
                                     params, h=h)
    out = jax.block_until_ready(out)
    ref = reference_forward(node, node, node, mask, adj, dist, params, h=h)
    np.testing.assert_allclose(np.asarray(out), np.asarray(ref),
                               rtol=1e-4, atol=1e-4)

    # 2) distinct q/k/v path: fused 3-plane projection + 3-plane attention
    out2 = multi_headed_mat_attention(node, node2, node2, mask, adj, dist,
                                      params, h=h)
    out2 = jax.block_until_ready(out2)
    ref2 = reference_forward(node, node2, node2, mask, adj, dist, params, h=h)
    np.testing.assert_allclose(np.asarray(out2), np.asarray(ref2),
                               rtol=1e-4, atol=1e-4)

    print("KERNEL_OK")
</pallas_src>

<mosaic_0001>
module attributes {stable_mosaic.version = 11 : i64} {
  func.func @_probe_copy_kernel(%arg0: i32, %arg1: memref<8x128xf32, #tpu.memory_space<vmem>>, %arg2: memref<8x128xf32, #tpu.memory_space<vmem>>) attributes {dimension_semantics = [#tpu.dimension_semantics<arbitrary>], iteration_bounds = array<i64: 2>, scalar_prefetch = 0 : i64, scratch_operands = 0 : i64, tpu.core_type = #tpu.core_type<tc>, window_params = [{pipeline_mode = #tpu.pipeline_mode<synchronous>, transform_indices = @transform_0, window_bounds = array<i64: 8, 128>}, {pipeline_mode = #tpu.pipeline_mode<synchronous>, transform_indices = @transform_1, window_bounds = array<i64: 8, 128>}]} {
    %c0 = arith.constant 0 : index
    %c0_0 = arith.constant 0 : index
    %0 = vector.load %arg1[%c0, %c0_0] : memref<8x128xf32, #tpu.memory_space<vmem>>, vector<8x128xf32>
    %c0_1 = arith.constant 0 : index
    %c0_2 = arith.constant 0 : index
    %1 = vector.load %arg2[%c0_1, %c0_2] : memref<8x128xf32, #tpu.memory_space<vmem>>, vector<8x128xf32>
    tpu.vector_store %arg2[%c0_1, %c0_2], %0 {strides = array<i32>} : memref<8x128xf32, #tpu.memory_space<vmem>>, vector<8x128xf32>,
    return
  }
  func.func @transform_0(%arg0: i32) -> (i32, i32) {
    %c0_i32 = arith.constant 0 : i32
    %c0_i32_0 = arith.constant 0 : i32
    %c0_i32_1 = arith.constant 0 : i32
    return %c0_i32, %c0_i32_0 : i32, i32
  }
  func.func @transform_1(%arg0: i32) -> (i32, i32) {
    %c0_i32 = arith.constant 0 : i32
    %c0_i32_0 = arith.constant 0 : i32
    %c0_i32_1 = arith.constant 0 : i32
    return %c0_i32, %c0_i32_0 : i32, i32
  }
}

module attributes {stable_mosaic.version = 11 : i64} {
  func.func @linear_kernel(%arg0: i32, %arg1: memref<16x32xf32, #tpu.memory_space<vmem>>, %arg2: memref<32x32xf32, #tpu.memory_space<vmem>>, %arg3: memref<1x32xf32, #tpu.memory_space<vmem>>, %arg4: memref<16x32xf32, #tpu.memory_space<vmem>>) attributes {dimension_semantics = [#tpu.dimension_semantics<parallel>], iteration_bounds = array<i64: 1>, scalar_prefetch = 0 : i64, scratch_operands = 0 : i64, tpu.core_type = #tpu.core_type<tc>, window_params = [{transform_indices = @transform_0, window_bounds = array<i64: 16, 32>}, {pipeline_mode = #tpu.pipeline_mode<synchronous>, transform_indices = @transform_1, window_bounds = array<i64: 32, 32>}, {pipeline_mode = #tpu.pipeline_mode<synchronous>, transform_indices = @transform_2, window_bounds = array<i64: 1, 32>}, {transform_indices = @transform_3, window_bounds = array<i64: 16, 32>}]} {
    %c0 = arith.constant 0 : index
    %c0_0 = arith.constant 0 : index
    %0 = vector.load %arg1[%c0, %c0_0] : memref<16x32xf32, #tpu.memory_space<vmem>>, vector<16x32xf32>
    %c0_1 = arith.constant 0 : index
    %c0_2 = arith.constant 0 : index
    %1 = vector.load %arg2[%c0_1, %c0_2] : memref<32x32xf32, #tpu.memory_space<vmem>>, vector<32x32xf32>
    %cst = arith.constant dense<0.000000e+00> : vector<16x32xf32>
    %2 = tpu.matmul %0, %1, %cst {dimension_numbers = #tpu.dot_dimension_numbers<[1], [0], [0], [1], [0, 0, 1, 1], [], []>} : vector<16x32xf32>, vector<32x32xf32>, vector<16x32xf32> -> vector<16x32xf32>
    %c0_3 = arith.constant 0 : index
    %c0_4 = arith.constant 0 : index
    %3 = vector.load %arg3[%c0_3, %c0_4] : memref<1x32xf32, #tpu.memory_space<vmem>>, vector<1x32xf32>
    %4 = vector.broadcast %3 : vector<1x32xf32> to vector<16x32xf32>
    %5 = arith.addf %2, %4 : vector<16x32xf32>
    %c0_5 = arith.constant 0 : index
    %c0_6 = arith.constant 0 : index
    %6 = vector.load %arg4[%c0_5, %c0_6] : memref<16x32xf32, #tpu.memory_space<vmem>>, vector<16x32xf32>
    tpu.vector_store %arg4[%c0_5, %c0_6], %5 {strides = array<i32>} : memref<16x32xf32, #tpu.memory_space<vmem>>, vector<16x32xf32>,
    return
  }
  func.func @transform_0(%arg0: i32) -> (i32, i32) {
    %c0_i32 = arith.constant 0 : i32
    %c0_i32_0 = arith.constant 0 : i32
    return %arg0, %c0_i32 : i32, i32
  }
  func.func @transform_1(%arg0: i32) -> (i32, i32) {
    %c0_i32 = arith.constant 0 : i32
    %c0_i32_0 = arith.constant 0 : i32
    %c0_i32_1 = arith.constant 0 : i32
    return %c0_i32, %c0_i32_0 : i32, i32
  }
  func.func @transform_2(%arg0: i32) -> (i32, i32) {
    %c0_i32 = arith.constant 0 : i32
    %c0_i32_0 = arith.constant 0 : i32
    %c0_i32_1 = arith.constant 0 : i32
    return %c0_i32, %c0_i32_0 : i32, i32
  }
  func.func @transform_3(%arg0: i32) -> (i32, i32) {
    %c0_i32 = arith.constant 0 : i32
    %c0_i32_0 = arith.constant 0 : i32
    return %arg0, %c0_i32 : i32, i32
  }
}

</mosaic_0001>

<llo_original>
// kernel: tpu_custom_call.1
$region0: #{tpu_custom_call.1}
  #allocation0 [shape = 'u32[]', space=smem, size = 0x4, offset = 0x4, fixed_abs, tag = 'smem constant byte address 0x4 - core index']
  #allocation1 [shape = 'u32[144,128]{1,0:T(1,128)}', space=vmem, size = 0x12000, scoped, tag = 'internal scratch']
  %s0 = inlined_call_operand.hbm [shape: f32[8,128], index: 0, kind: input, shape index: {}]
  %s1 = inlined_call_operand.hbm [shape: f32[8,128], index: 1, kind: output, shape index: {}]
  %s2 = sld [smem:[#allocation0]]
  $region41: #{tpu_custom_call.1} parent=0
    _
  %s4 = ssub.s32 1, %s2
  %s5 = scalar_select 0, %s4, %s2
  $region1: #{tpu_custom_call.1} parent=0
    #allocation2 [shape = 'u8[4096]{0}', space=vmem, size = 0x1000, scoped, tag = 'input window, operand 0, single buffered']
    #allocation3 [shape = 's32[2]{0}', space=sflag, size = 0x8, scoped, tag = 'scoped memory for tpu_custom_call.1']
    #allocation4 [shape = 's32[2]{0}', space=sflag, size = 0x8, scoped, tag = 'scoped memory for tpu_custom_call.1']
    #allocation5 [shape = 'u8[4096]{0}', space=vmem, size = 0x1000, scoped, tag = 'output window, operand 0, single buffered']
    %6 = vsyncpa [#allocation3], 0
    %7 = vsyncpa [#allocation4], 0
    loop: start=0, step=1, limit=4
    $region2: #{tpu_custom_call.1} parent=1 // loop_pre_header
      _
    $region3: #{tpu_custom_call.1} parent=1 // loop_header
      %s9 = sphi 0, %s13
      %p10 = scmp.ge.s32.totalorder %s9, 4
      %s17 = sphi 0, %s17
      %s19 = sphi 0, %s17
      %s20 = sphi 0, %s19
      %s34 = sphi 0, %s20
      %s38 = sphi 0, %s38
      %s40 = sphi 0, %s38
      %s41 = sphi 0, %s40
      %s55 = sphi 0, %s41
    $region4: #{tpu_custom_call.1} parent=1 // loop_header_branch
      %12 = sbr.rel (%p10) target = $region8
    $region5: #{tpu_custom_call.1} parent=1 // loop_body
      %s14 = ssub.s32 %s9, 1
      %s15 = ssub.s32 %s9, 2
      %s16 = sadd.s32 %s9, 1
      %s18 = sadd.s32 %s17, 1
      %p21 = scmp.eq.s32.totalorder %s9, 1
      %p22 = scmp.ne.s32.totalorder %s17, %s19
      %p23 = scmp.eq.s32.totalorder %s9, 0
      %p24 = por %p22, %p23
      %p25 = scmp.ne.s32.totalorder %s17, %s19
      %p26 = scmp.eq.s32.totalorder %s14, 1
      %p27 = por %p25, %p26
      %p28 = scmp.ne.s32.totalorder %s19, %s20
      %p29 = scmp.eq.s32.totalorder %s14, 0
      %p30 = por %p28, %p29
      %p31 = scmp.ne.s32.totalorder %s19, %s20
      %p32 = scmp.eq.s32.totalorder %s15, 1
      %p33 = por %p31, %p32
      %p35 = scmp.ne.s32.totalorder %s20, %s34
      %p36 = scmp.eq.s32.totalorder %s15, 0
      %p37 = por %p35, %p36
      %s39 = sadd.s32 %s38, 1
      %p42 = scmp.eq.s32.totalorder %s9, 1
      %p43 = scmp.ne.s32.totalorder %s38, %s40
      %p44 = scmp.eq.s32.totalorder %s9, 0
      %p45 = por %p43, %p44
      %p46 = scmp.ne.s32.totalorder %s38, %s40
      %p47 = scmp.eq.s32.totalorder %s14, 1
      %p48 = por %p46, %p47
      %p49 = scmp.ne.s32.totalorder %s40, %s41
      %p50 = scmp.eq.s32.totalorder %s14, 0
      %p51 = por %p49, %p50
      %p52 = scmp.ne.s32.totalorder %s40, %s41
      %p53 = scmp.eq.s32.totalorder %s15, 1
      %p54 = por %p52, %p53
      %p56 = scmp.ne.s32.totalorder %s41, %s55
      %p57 = scmp.eq.s32.totalorder %s15, 0
      %p58 = por %p56, %p57
      %p59 = scmp.le.s32.totalorder 1, %s9
      %p60 = scmp.lt.s32.totalorder %s9, 3
      %p61 = pnand %p59, %p60
      %p62 = pneg %p61
      // Predicated region
      $region9: #{tpu_custom_call.1} parent=5 // pred_check
        _
      $region10: #{tpu_custom_call.1} parent=5 // pred_check_branch
        %64 = sbr.rel (%p61) target = $region12
      $region11: #{tpu_custom_call.1} parent=5 // pred_region
        %s65 = ssub.s32 %s9, 1
        // Predicated region
        $region13: #{tpu_custom_call.1} parent=11 // pred_check
          %p66 = pneg %p30
        $region14: #{tpu_custom_call.1} parent=11 // pred_check_branch
          %68 = sbr.rel (%p66) target = $region16
        $region15: #{tpu_custom_call.1} parent=11 // pred_region
          %s70 = ssub.s32 128, 128
          %71 = vsyncadd [#allocation3], %s70
          %s73 = sshll.u32 [#allocation2], 4
          %s74 = int_to_ptr.vmem [resolvable:$true] %s73
          %76 = dma.hbm_to_vmem [thread:$0]  %s0, 128, %s74, [#allocation3]
        $region16: #{tpu_custom_call.1} parent=11 // pred_fallthru
          _
      $region12: #{tpu_custom_call.1} parent=5 // pred_fallthru
        _
      %p77 = scmp.lt.s32.totalorder %s9, 2
      // Predicated region
      $region17: #{tpu_custom_call.1} parent=5 // pred_check
        %p78 = pneg %p77
      $region18: #{tpu_custom_call.1} parent=5 // pred_check_branch
        %80 = sbr.rel (%p78) target = $region20
      $region19: #{tpu_custom_call.1} parent=5 // pred_region
        _
      $region20: #{tpu_custom_call.1} parent=5 // pred_fallthru
        _
      %p81 = scmp.le.s32.totalorder 1, %s9
      %p82 = scmp.lt.s32.totalorder %s9, 3
      %p83 = pnand %p81, %p82
      %p84 = pneg %p83
      // Predicated region
      $region21: #{tpu_custom_call.1} parent=5 // pred_check
        _
      $region22: #{tpu_custom_call.1} parent=5 // pred_check_branch
        %86 = sbr.rel (%p83) target = $region24
      $region23: #{tpu_custom_call.1} parent=5 // pred_region
        %s87 = ssub.s32 %s9, 1
        // Predicated region
        $region25: #{tpu_custom_call.1} parent=23 // pred_check
          %p88 = pneg %p30
        $region26: #{tpu_custom_call.1} parent=23 // pred_check_branch
          %90 = sbr.rel (%p88) target = $region28
        $region27: #{tpu_custom_call.1} parent=23 // pred_region
          %91 = dma.done [#allocation3], 128
        $region28: #{tpu_custom_call.1} parent=23 // pred_fallthru
          _
        %p92 = pneg %p30
        %p93 = pneg %p27
        %p94 = pneg %p51
        %p95 = pneg %p48
        %v96 = vld [vmem:[#allocation2] sm:$0xff]
        %97 = vst [vmem:[#allocation5] sm:$0xff] %v96
        // Predicated region
        $region29: #{tpu_custom_call.1} parent=23 // pred_check
          %p98 = pneg %p48
        $region30: #{tpu_custom_call.1} parent=23 // pred_check_branch
          %100 = sbr.rel (%p98) target = $region32
        $region31: #{tpu_custom_call.1} parent=23 // pred_region
          %s102 = ssub.s32 128, 128
          %103 = vsyncadd [#allocation4], %s102
          %s105 = sshll.u32 [#allocation5], 4
          %s106 = int_to_ptr.vmem [resolvable:$true] %s105
          %108 = dma.vmem_to_hbm [thread:$0]  %s106, 128, %s1, [#allocation4]
        $region32: #{tpu_custom_call.1} parent=23 // pred_fallthru
          _
        // Predicated region
        $region33: #{tpu_custom_call.1} parent=23 // pred_check
          %p109 = pneg %p48
        $region34: #{tpu_custom_call.1} parent=23 // pred_check_branch
          %111 = sbr.rel (%p109) target = $region36
        $region35: #{tpu_custom_call.1} parent=23 // pred_region
          %112 = dma.done [#allocation4], 128
        $region36: #{tpu_custom_call.1} parent=23 // pred_fallthru
          _
      $region24: #{tpu_custom_call.1} parent=5 // pred_fallthru
        _
      %p113 = scmp.le.s32.totalorder 2, %s9
      // Predicated region
      $region37: #{tpu_custom_call.1} parent=5 // pred_check
        %p114 = pneg %p113
      $region38: #{tpu_custom_call.1} parent=5 // pred_check_branch
        %116 = sbr.rel (%p114) target = $region40
      $region39: #{tpu_custom_call.1} parent=5 // pred_region
        %s117 = ssub.s32 %s9, 2
      $region40: #{tpu_custom_call.1} parent=5 // pred_fallthru
        _
    $region6: #{tpu_custom_call.1} parent=1 // loop_footer
      %s13 = sadd.s32 1, %s9
    $region7: #{tpu_custom_call.1} parent=1 // loop_footer_branch
      %8 = sbr.rel target = $region3
    $region8: #{tpu_custom_call.1} parent=1 // loop_exit
      _
    %118 = vsyncpa [#allocation3], 1
    %s119 = scalar_lea.sflag [#allocation3], 1
    %120 = vsyncpa %s119, 1
    %121 = vsyncpa [#allocation4], 1
    %s122 = scalar_lea.sflag [#allocation4], 1
    %123 = vsyncpa %s122, 1

// kernel: tpu_custom_call.1
$region0: #{tpu_custom_call.1}
  #allocation0 [shape = 'u32[]', space=smem, size = 0x4, offset = 0x4, fixed_abs, tag = 'smem constant byte address 0x4 - core index']
  #allocation1 [shape = 'u32[144,128]{1,0:T(1,128)}', space=vmem, size = 0x12000, scoped, tag = 'internal scratch']
  %s0 = inlined_call_operand.hbm [shape: f32[16,32], index: 0, kind: input, shape index: {}]
  %s1 = inlined_call_operand.hbm [shape: f32[32,32], index: 1, kind: input, shape index: {}]
  %s2 = inlined_call_operand.vmem [shape: f32[1,32], index: 2, kind: input, shape index: {}]
  %s3 = inlined_call_operand.hbm [shape: f32[16,32], index: 3, kind: output, shape index: {}]
  %s4 = sld [smem:[#allocation0]]
  $region30: #{tpu_custom_call.1} parent=0
    _
  %s6 = ssub.s32 1, %s4
  %s7 = scalar_select 0, %s6, %s4
  $region1: #{tpu_custom_call.1} parent=0
    #allocation2 [shape = 'u8[8192]{0}', space=vmem, size = 0x2000, scoped, tag = 'input window, operand 0, single buffered']
    #allocation3 [shape = 's32[1]{0}', space=sflag, size = 0x4, scoped, tag = 'scoped memory for tpu_custom_call.1']
    #allocation4 [shape = 's32[1]{0}', space=sflag, size = 0x4, scoped, tag = 'scoped memory for tpu_custom_call.1']
    #allocation5 [shape = 'u8[16384]{0}', space=vmem, size = 0x4000, scoped, tag = 'input window, operand 1, single buffered']
    #allocation6 [shape = 's32[1]{0}', space=sflag, size = 0x4, scoped, tag = 'scoped memory for tpu_custom_call.1']
    #allocation7 [shape = 'u8[8192]{0}', space=vmem, size = 0x2000, scoped, tag = 'output window, operand 0, single buffered']
    %8 = vsyncpa [#allocation3], 0
    %9 = vsyncpa [#allocation6], 0
    %10 = vsyncpa [#allocation4], 0
    // Predicated region
    $region2: #{tpu_custom_call.1} parent=1 // pred_check
      _
    $region3: #{tpu_custom_call.1} parent=1 // pred_check_branch
      %12 = sbr.rel (0) target = $region5
    $region4: #{tpu_custom_call.1} parent=1 // pred_region
      %s14 = ssub.s32 256, 256
      %15 = vsyncadd [#allocation3], %s14
      %s16 = sshll.u32 [#allocation2], 4
      %s17 = int_to_ptr.vmem [resolvable:$true] %s16
      %22 = dma.hbm_to_vmem [thread:$0]  %s0, 256, %s17, [#allocation3], 128, 128, 8
    $region5: #{tpu_custom_call.1} parent=1 // pred_fallthru
      _
    // Predicated region
    $region6: #{tpu_custom_call.1} parent=1 // pred_check
      _
    $region7: #{tpu_custom_call.1} parent=1 // pred_check_branch
      %24 = sbr.rel (0) target = $region9
    $region8: #{tpu_custom_call.1} parent=1 // pred_region
      %s26 = ssub.s32 512, 512
      %27 = vsyncadd [#allocation6], %s26
      %s28 = sshll.u32 [#allocation5], 4
      %s29 = int_to_ptr.vmem [resolvable:$true] %s28
      %34 = dma.hbm_to_vmem [thread:$0]  %s1, 512, %s29, [#allocation6], 128, 128, 8
    $region9: #{tpu_custom_call.1} parent=1 // pred_fallthru
      _
    // Predicated region
    $region10: #{tpu_custom_call.1} parent=1 // pred_check
      _
    $region11: #{tpu_custom_call.1} parent=1 // pred_check_branch
      %36 = sbr.rel (0) target = $region13
    $region12: #{tpu_custom_call.1} parent=1 // pred_region
      _
    $region13: #{tpu_custom_call.1} parent=1 // pred_fallthru
      _
    // Predicated region
    $region14: #{tpu_custom_call.1} parent=1 // pred_check
      _
    $region15: #{tpu_custom_call.1} parent=1 // pred_check_branch
      %38 = sbr.rel (0) target = $region17
    $region16: #{tpu_custom_call.1} parent=1 // pred_region
      %39 = dma.done [#allocation3], 256
    $region17: #{tpu_custom_call.1} parent=1 // pred_fallthru
      _
    // Predicated region
    $region18: #{tpu_custom_call.1} parent=1 // pred_check
      _
    $region19: #{tpu_custom_call.1} parent=1 // pred_check_branch
      %41 = sbr.rel (0) target = $region21
    $region20: #{tpu_custom_call.1} parent=1 // pred_region
      %42 = dma.done [#allocation6], 512
    $region21: #{tpu_custom_call.1} parent=1 // pred_fallthru
      _
    %v43 = vld [vmem:[#allocation2] sm:$0xff]
    %v44 = vld [vmem:[#allocation2 + $0x8] sm:$0xff]
    %v45 = vld [vmem:[#allocation5] sm:$0xff]
    %v46 = vld [vmem:[#allocation5 + $0x8] sm:$0xff]
    %v47 = vld [vmem:[#allocation5 + $0x10] sm:$0xff]
    %v48 = vld [vmem:[#allocation5 + $0x18] sm:$0xff]
    %v49 = vld [vmem:[%s2] sm:$0x1]
    %v51 = vlaneseq
    %v52 = vshrl.u32 %v51, 7
    %v53 = vsub.s32 0, %v52
    %v54 = vrot.slane %v49, %v53
    %vm56 = vcmask 261120
    %v58 = vsel %vm56, %v43, 0
    %v61 = vsel %vm56, %v44, 0
    %63 = vmatprep.subr.mxu0 0.0
    %64 = vmatpush1.msra.mxu0 0.0
    %65 = vmatprep.subr.mxu0 0.0
    %66 = vmatpush1.msra.mxu0 0.0
    %67 = vmatprep.subr.mxu0 0.0
    %68 = vmatpush1.msra.mxu0 0.0
    %69 = vmatprep.subr.mxu0 0.0
    %70 = vmatpush1.msra.mxu0 0.0
    %71 = vmatprep.subr.mxu0 0.0
    %72 = vmatpush1.msra.mxu0 0.0
    %73 = vmatprep.subr.mxu0 0.0
    %74 = vmatpush1.msra.mxu0 0.0
    %75 = vmatprep.subr.mxu0 0.0
    %76 = vmatpush1.msra.mxu0 0.0
    %77 = vmatprep.subr.mxu0 0.0
    %78 = vmatpush1.msra.mxu0 0.0
    %79 = vmatprep.subr.mxu0 0.0
    %80 = vmatpush1.msra.mxu0 0.0
    %81 = vmatprep.subr.mxu0 0.0
    %82 = vmatpush1.msra.mxu0 0.0
    %83 = vmatprep.subr.mxu0 0.0
    %84 = vmatpush1.msra.mxu0 0.0
    %85 = vmatprep.subr.mxu0 0.0
    %86 = vmatpush1.msra.mxu0 0.0
    %87 = vmatprep.subr.mxu0 0.0
    %88 = vmatpush1.msra.mxu0 %v48
    %89 = vmatprep.subr.mxu0 0.0
    %90 = vmatpush1.msra.mxu0 %v47
    %91 = vmatprep.subr.mxu0 0.0
    %92 = vmatpush1.msra.mxu0 %v46
    %93 = vmatprep.subr.mxu0 0.0
    %94 = vmatpush1.msra.mxu0 %v45
    %95 = vmatprep.subr.mxu0 0.0
    %96 = vmatpush2.msra.mxu0 0.0
    %97 = vmatprep.subr.mxu0 0.0
    %98 = vmatpush2.msra.mxu0 0.0
    %99 = vmatprep.subr.mxu0 0.0
    %100 = vmatpush2.msra.mxu0 0.0
    %101 = vmatprep.subr.mxu0 0.0
    %102 = vmatpush2.msra.mxu0 0.0
    %103 = vmatprep.subr.mxu0 0.0
    %104 = vmatpush2.msra.mxu0 0.0
    %105 = vmatprep.subr.mxu0 0.0
    %106 = vmatpush2.msra.mxu0 0.0
    %107 = vmatprep.subr.mxu0 0.0
    %108 = vmatpush2.msra.mxu0 0.0
    %109 = vmatprep.subr.mxu0 0.0
    %110 = vmatpush2.msra.mxu0 0.0
    %111 = vmatprep.subr.mxu0 0.0
    %112 = vmatpush2.msra.mxu0 0.0
    %113 = vmatprep.subr.mxu0 0.0
    %114 = vmatpush2.msra.mxu0 0.0
    %115 = vmatprep.subr.mxu0 0.0
    %116 = vmatpush2.msra.mxu0 0.0
    %117 = vmatprep.subr.mxu0 0.0
    %118 = vmatpush2.msra.mxu0 0.0
    %119 = vmatprep.subr.mxu0 0.0
    %120 = vmatpush2.msra.mxu0 0.0
    %121 = vmatprep.subr.mxu0 0.0
    %122 = vmatpush2.msra.mxu0 0.0
    %123 = vmatprep.subr.mxu0 0.0
    %124 = vmatpush2.msra.mxu0 0.0
    %125 = vmatprep.subr.mxu0 0.0
    %126 = vmatpush2.msra.mxu0 0.0
    %127 = vmatprep.mubr.f32.mxu0 0.0
    %128 = vmatmul.mubr.f32.gmra.mxu0 %v58
    %v129 = vpop.f32.mrf.mxu0
    %v130 = vadd.f32 %v54, %v129
    %v131 = vpop.f32.mrf.mxu0
    %132 = vmatprep.mubr.f32.mxu0 0.0
    %133 = vmatmul.mubr.f32.gmra.mxu0 %v61
    %v134 = vpop.f32.mrf.mxu0
    %v135 = vadd.f32 %v54, %v134
    %v136 = vpop.f32.mrf.mxu0
    %137 = vdwg.mxu0
    %138 = vst.msk [vmem:[#allocation7] sm:$0xff] %vm56, %v130
    %139 = vst.msk [vmem:[#allocation7 + $0x8] sm:$0xff] %vm56, %v135
    // Predicated region
    $region22: #{tpu_custom_call.1} parent=1 // pred_check
      _
    $region23: #{tpu_custom_call.1} parent=1 // pred_check_branch
      %141 = sbr.rel (0) target = $region25
    $region24: #{tpu_custom_call.1} parent=1 // pred_region
      %s143 = ssub.s32 256, 256
      %144 = vsyncadd [#allocation4], %s143
      %s145 = sshll.u32 [#allocation7], 4
      %s146 = int_to_ptr.vmem [resolvable:$true] %s145
      %151 = dma.vmem_to_hbm [thread:$0]  %s146, 256, %s3, [#allocation4], 128, 128, 8
    $region25: #{tpu_custom_call.1} parent=1 // pred_fallthru
      _
    // Predicated region
    $region26: #{tpu_custom_call.1} parent=1 // pred_check
      _
    $region27: #{tpu_custom_call.1} parent=1 // pred_check_branch
      %153 = sbr.rel (0) target = $region29
    $region28: #{tpu_custom_call.1} parent=1 // pred_region
      %154 = dma.done [#allocation4], 256
    $region29: #{tpu_custom_call.1} parent=1 // pred_fallthru
      _
    %155 = vsyncpa [#allocation3], 1
    %156 = vsyncpa [#allocation6], 1
    %157 = vsyncpa [#allocation4], 1

</llo_original>
